<compile_context>
chip_gen: v5e
topology: v5e:2x2
jax: 0.10.0
libtpu: 0.0.40
codegen_flags: <defaults>
</compile_context>

<pallas_src>
import functools

import jax
import jax.numpy as jnp
from jax import lax
from jax.experimental import pallas as pl
from jax.experimental.pallas import tpu as pltpu

GAMMA = 3          # integer exponent -> explicit cube in the kernel
IGNORE_INDEX = -100


def _round_up(x, m):
    return ((x + m - 1) // m) * m


def _choose_tile_n(n, c, itemsize, requested):
    # Keep one input tile around ~2 MiB so (double-buffered input + f32 working set)
    # stays well inside scoped VMEM on every TPU generation.
    budget = 2 << 20
    rows = max(8, budget // max(1, c * itemsize))
    rows = min(rows, requested)
    rows = min(rows, _round_up(n, 8))
    return _round_up(rows, 8)


def focal_loss_kernel(x_ref, t_ref, out_ref):
    x = x_ref[...].astype(jnp.float32)            # (TILE_N, C) upcast in-kernel
    t = t_ref[...]                                # (TILE_N, 1) int32

    # log-softmax pieces along the class (lane) axis
    m = jnp.max(x, axis=1, keepdims=True)                      # (TILE_N, 1)
    z = x - m                                                   # (TILE_N, C)
    lse = jnp.log(jnp.sum(jnp.exp(z), axis=1, keepdims=True))  # (TILE_N, 1)

    # Gather the target column FIRST (one-hot sum), then do all focal math on
    # the per-row column only.  Ignored rows (t = -100) match no class column,
    # so their one-hot is all-zero and they are masked out by `valid` below.
    col = lax.broadcasted_iota(jnp.int32, z.shape, 1)           # (TILE_N, C)
    onehot = (col == t).astype(jnp.float32)
    z_t = jnp.sum(z * onehot, axis=1, keepdims=True)            # (TILE_N, 1)

    logpt_t = z_t - lse                                         # (TILE_N, 1)
    pt_t = jnp.exp(logpt_t)
    q = 1.0 - pt_t
    focal_t = (q * q * q) * logpt_t               # explicit cube, no float pow

    valid = (t != IGNORE_INDEX).astype(jnp.float32)             # (TILE_N, 1)
    neg = -jnp.sum(focal_t * valid)               # scalar partial (this block)
    cnt = jnp.sum(valid)                          # scalar partial (this block)

    # single lane-dense partial block: sublane 0 = neg, sublane 1 = count
    row = lax.broadcasted_iota(jnp.int32, out_ref.shape, 1)     # (1, 2, 128)
    out_ref[...] = jnp.where(row == 0, neg, cnt).astype(jnp.float32)


@functools.partial(jax.jit, static_argnames=("tile_n",))
def focal_loss(x, target, tile_n=512):
    """x: [N, C] float32/bf16 logits, target: [N] int -> scalar float32 loss."""
    n, c = x.shape
    itemsize = jnp.dtype(x.dtype).itemsize
    tile_n = _choose_tile_n(n, c, itemsize, tile_n)
    num_blocks = pl.cdiv(n, tile_n)
    n_pad = num_blocks * tile_n

    if n_pad != n:
        # padded rows are ignored: target=IGNORE_INDEX -> valid=0, onehot=0
        x = jnp.pad(x, ((0, n_pad - n), (0, 0)))
        target = jnp.pad(target, (0, n_pad - n), constant_values=IGNORE_INDEX)
    t2 = target.reshape(n_pad, 1).astype(jnp.int32)

    tile_in_bytes = tile_n * c * itemsize
    f32_work = tile_n * c * 4
    # double-buffered input + f32 working set + slack; clamped for v5e/v6e/v7x budgets
    vmem_limit = int(min(100 << 20,
                         max(4 << 20, 2 * tile_in_bytes + 4 * f32_work + (2 << 20))))

    cost = pl.CostEstimate(
        flops=8 * n_pad * c,
        transcendentals=n_pad * c + 3 * n_pad,
        bytes_accessed=n_pad * c * itemsize + n_pad * 4 + num_blocks * 2 * 128 * 4,
    )

    part = pl.pallas_call(
        focal_loss_kernel,
        out_shape=jax.ShapeDtypeStruct((num_blocks, 2, 128), jnp.float32),
        grid=(num_blocks,),
        in_specs=[
            pl.BlockSpec((tile_n, c), lambda i: (i, 0)),
            pl.BlockSpec((tile_n, 1), lambda i: (i, 0)),
        ],
        out_specs=pl.BlockSpec((1, 2, 128), lambda i: (i, 0, 0)),
        compiler_params=pltpu.CompilerParams(
            dimension_semantics=("parallel",),
            vmem_limit_bytes=vmem_limit,
        ),
        cost_estimate=cost,
    )(x, t2)

    # tiny final reduction + divide in plain JAX (keeps the grid axis parallel)
    neg_total = jnp.sum(part[:, 0, 0])
    cnt_total = jnp.sum(part[:, 1, 0])
    return neg_total / cnt_total


def focal_loss_ref(x, target):
    """Pure-JAX reference matching the PyTorch module (gamma=3, mean nll)."""
    logpt = jax.nn.log_softmax(x.astype(jnp.float32), axis=1)
    pt = jnp.exp(logpt)
    f = ((1.0 - pt) ** GAMMA) * logpt
    valid = target != IGNORE_INDEX
    t_safe = jnp.where(valid, target, 0)
    picked = jnp.take_along_axis(f, t_safe[:, None], axis=1)[:, 0]
    return -jnp.sum(jnp.where(valid, picked, 0.0)) / jnp.sum(valid.astype(jnp.float32))


if __name__ == "__main__":
    key = jax.random.PRNGKey(0)
    k_x, k_t, k_x2, k_t2 = jax.random.split(key, 4)

    # small case (single tile), with an ignored sample to exercise ignore_index
    N, C = 8, 32
    x = jax.random.normal(k_x, (N, C), dtype=jnp.float32)
    target = jax.random.randint(k_t, (N,), 0, C, dtype=jnp.int32)
    target = target.at[3].set(IGNORE_INDEX)

    out = jax.block_until_ready(focal_loss(x, target))
    ref = focal_loss_ref(x, target)
    assert jnp.allclose(out, ref, rtol=1e-5, atol=1e-6), (out, ref)

    # multi-tile + row-padding case (N not a multiple of the tile)
    N2, C2 = 100, 32
    x2 = jax.random.normal(k_x2, (N2, C2), dtype=jnp.float32)
    target2 = jax.random.randint(k_t2, (N2,), 0, C2, dtype=jnp.int32)
    target2 = target2.at[17].set(IGNORE_INDEX)

    out2 = jax.block_until_ready(focal_loss(x2, target2, tile_n=32))
    ref2 = focal_loss_ref(x2, target2)
    assert jnp.allclose(out2, ref2, rtol=1e-5, atol=1e-6), (out2, ref2)

    print("KERNEL_OK")
</pallas_src>

<mosaic_0001>
module attributes {stable_mosaic.version = 11 : i64} {
  func.func @focal_loss_kernel(%arg0: i32, %arg1: memref<8x32xf32, #tpu.memory_space<vmem>>, %arg2: memref<8x1xi32, #tpu.memory_space<vmem>>, %arg3: memref<1x2x128xf32, #tpu.memory_space<vmem>>) attributes {dimension_semantics = [#tpu.dimension_semantics<parallel>], iteration_bounds = array<i64: 1>, scalar_prefetch = 0 : i64, scratch_operands = 0 : i64, tpu.core_type = #tpu.core_type<tc>, window_params = [{transform_indices = @transform_0, window_bounds = array<i64: 8, 32>}, {transform_indices = @transform_1, window_bounds = array<i64: 8, 1>}, {transform_indices = @transform_2, window_bounds = array<i64: 1, 2, 128>}]} {
    %c0 = arith.constant 0 : index
    %c0_0 = arith.constant 0 : index
    %0 = vector.load %arg1[%c0, %c0_0] : memref<8x32xf32, #tpu.memory_space<vmem>>, vector<8x32xf32>
    %c0_1 = arith.constant 0 : index
    %c0_2 = arith.constant 0 : index
    %1 = vector.load %arg2[%c0_1, %c0_2] : memref<8x1xi32, #tpu.memory_space<vmem>>, vector<8x1xi32>
    %cst = arith.constant dense<0xFF800000> : vector<8xf32>
    %2 = vector.multi_reduction <maximumf>, %0, %cst [1] : vector<8x32xf32> to vector<8xf32>
    %3 = vector.shape_cast %2 : vector<8xf32> to vector<8x1xf32>
    %4 = vector.broadcast %3 : vector<8x1xf32> to vector<8x32xf32>
    %5 = arith.subf %0, %4 : vector<8x32xf32>
    %6 = math.exp %5 : vector<8x32xf32>
    %cst_3 = arith.constant dense<0.000000e+00> : vector<8xf32>
    %7 = vector.multi_reduction <add>, %6, %cst_3 [1] : vector<8x32xf32> to vector<8xf32>
    %8 = vector.shape_cast %7 : vector<8xf32> to vector<8x1xf32>
    %9 = math.log %8 : vector<8x1xf32>
    %10 = tpu.iota {dimensions = array<i32: 1>} : vector<8x32xi32>
    %11 = vector.broadcast %1 : vector<8x1xi32> to vector<8x32xi32>
    %12 = arith.cmpi eq, %10, %11 : vector<8x32xi32>
    %13 = arith.extui %12 : vector<8x32xi1> to vector<8x32xi32>
    %14 = arith.sitofp %13 : vector<8x32xi32> to vector<8x32xf32>
    %15 = arith.mulf %5, %14 : vector<8x32xf32>
    %cst_4 = arith.constant dense<0.000000e+00> : vector<8xf32>
    %16 = vector.multi_reduction <add>, %15, %cst_4 [1] : vector<8x32xf32> to vector<8xf32>
    %17 = vector.shape_cast %16 : vector<8xf32> to vector<8x1xf32>
    %18 = arith.subf %17, %9 : vector<8x1xf32>
    %19 = math.exp %18 : vector<8x1xf32>
    %cst_5 = arith.constant 1.000000e+00 : f32
    %20 = vector.broadcast %cst_5 : f32 to vector<8x1xf32>
    %21 = arith.subf %20, %19 : vector<8x1xf32>
    %22 = arith.mulf %21, %21 : vector<8x1xf32>
    %23 = arith.mulf %22, %21 : vector<8x1xf32>
    %24 = arith.mulf %23, %18 : vector<8x1xf32>
    %c-100_i32 = arith.constant -100 : i32
    %25 = vector.broadcast %c-100_i32 : i32 to vector<8x1xi32>
    %26 = arith.cmpi ne, %1, %25 : vector<8x1xi32>
    %27 = arith.extui %26 : vector<8x1xi1> to vector<8x1xi32>
    %28 = arith.sitofp %27 : vector<8x1xi32> to vector<8x1xf32>
    %29 = arith.mulf %24, %28 : vector<8x1xf32>
    %30 = vector.shape_cast %29 : vector<8x1xf32> to vector<1x8x1xf32>
    %cst_6 = arith.constant dense<0.000000e+00> : vector<1xf32>
    %31 = vector.multi_reduction <add>, %30, %cst_6 [1, 2] : vector<1x8x1xf32> to vector<1xf32>
    %32 = vector.shape_cast %31 : vector<1xf32> to vector<1x1x1xf32>
    %33 = vector.extract %32[0, 0, 0] : f32 from vector<1x1x1xf32>
    %cst_7 = arith.constant 0.000000e+00 : f32
    %34 = arith.subf %cst_7, %33 : f32
    %35 = vector.shape_cast %28 : vector<8x1xf32> to vector<1x8x1xf32>
    %cst_8 = arith.constant dense<0.000000e+00> : vector<1xf32>
    %36 = vector.multi_reduction <add>, %35, %cst_8 [1, 2] : vector<1x8x1xf32> to vector<1xf32>
    %37 = vector.shape_cast %36 : vector<1xf32> to vector<1x1x1xf32>
    %38 = vector.extract %37[0, 0, 0] : f32 from vector<1x1x1xf32>
    %39 = tpu.iota {dimensions = array<i32: 1>} : vector<1x2x128xi32>
    %c0_i32 = arith.constant 0 : i32
    %40 = vector.broadcast %c0_i32 : i32 to vector<1x2x128xi32>
    %41 = arith.cmpi eq, %39, %40 : vector<1x2x128xi32>
    %42 = vector.broadcast %34 : f32 to vector<1x2x128xf32>
    %43 = vector.broadcast %38 : f32 to vector<1x2x128xf32>
    %44 = arith.select %41, %42, %43 : vector<1x2x128xi1>, vector<1x2x128xf32>
    %c0_9 = arith.constant 0 : index
    %c0_10 = arith.constant 0 : index
    %c0_11 = arith.constant 0 : index
    %45 = vector.load %arg3[%c0_9, %c0_10, %c0_11] : memref<1x2x128xf32, #tpu.memory_space<vmem>>, vector<1x2x128xf32>
    tpu.vector_store %arg3[%c0_9, %c0_10, %c0_11], %44 {strides = array<i32>} : memref<1x2x128xf32, #tpu.memory_space<vmem>>, vector<1x2x128xf32>,
    return
  }
  func.func @transform_0(%arg0: i32) -> (i32, i32) {
    %c0_i32 = arith.constant 0 : i32
    %c0_i32_0 = arith.constant 0 : i32
    return %arg0, %c0_i32 : i32, i32
  }
  func.func @transform_1(%arg0: i32) -> (i32, i32) {
    %c0_i32 = arith.constant 0 : i32
    %c0_i32_0 = arith.constant 0 : i32
    return %arg0, %c0_i32 : i32, i32
  }
  func.func @transform_2(%arg0: i32) -> (i32, i32, i32) {
    %c0_i32 = arith.constant 0 : i32
    %c0_i32_0 = arith.constant 0 : i32
    %c0_i32_1 = arith.constant 0 : i32
    return %arg0, %c0_i32, %c0_i32_0 : i32, i32, i32
  }
}

</mosaic_0001>

<llo_original>
// kernel: focal_loss.1
$region0: #{focal_loss.1}
  #allocation0 [shape = 'u32[]', space=smem, size = 0x4, offset = 0x4, fixed_abs, tag = 'smem constant byte address 0x4 - core index']
  #allocation1 [shape = 'u32[72,128]{1,0:T(1,128)}', space=vmem, size = 0x9000, scoped, tag = 'internal scratch']
  %s0 = inlined_call_operand.vmem [shape: f32[8,32], index: 0, kind: input, shape index: {}]
  %s1 = inlined_call_operand.vmem [shape: s32[8,1], index: 1, kind: input, shape index: {}]
  %s2 = inlined_call_operand.vmem [shape: f32[1,2,128], index: 2, kind: output, shape index: {}]
  %s3 = sld [smem:[#allocation0]]
  $region18: #{focal_loss.1} parent=0
    _
  %s5 = ssub.s32 1, %s3
  %s6 = scalar_select 0, %s5, %s3
  // Predicated region
  $region2: #{focal_loss.1} parent=0 // pred_check
    _
  $region3: #{focal_loss.1} parent=0 // pred_check_branch
    %8 = sbr.rel (0) target = $region5
  $region4: #{focal_loss.1} parent=0 // pred_region
    _
  $region5: #{focal_loss.1} parent=0 // pred_fallthru
    _
  // Predicated region
  $region6: #{focal_loss.1} parent=0 // pred_check
    _
  $region7: #{focal_loss.1} parent=0 // pred_check_branch
    %10 = sbr.rel (0) target = $region9
  $region8: #{focal_loss.1} parent=0 // pred_region
    _
  $region9: #{focal_loss.1} parent=0 // pred_fallthru
    _
  %v11 = vld [vmem:[%s0] sm:$0xff]
  %v12 = vld [vmem:[%s1] sm:$0xff]
  %vm13 = vcmask 261120
  %v14 = vsel %vm13, %v11, -inf
  %15 = vmax.xlane.f32.xlu0 %v14
  %v16 = vpop.xlane.xlu0 %15
  %v17 = vsub.f32 %v11, %v16
  %v18 = vmul.f32 %v17, 1.442695
  %v19 = vpow.pop %v18
  %v20 = vsel %vm13, %v19, 0.0
  %21 = vadd.xlane.f32.xlu0 %v20
  %v22 = vpop.xlane.xlu0 %21
  %v23 = vlog2.pop %v22
  %v24 = vmul.f32 %v23, 0.6931472
  %v25 = vlaneseq
  %v26 = vand.u32 %v25, 127
  %27 = vset.pattern.permute.xlu0 0
  %28 = vperm.xlu0 %27, %v12
  %v29 = vpop.permute.xlu0 %28
  %vm30 = vcmp.eq.s32.totalorder %v26, %v29
  %v31 = vsel %vm30, 1, 0
  %v32 = vcvt.s32.f32 %v31
  %v33 = vmul.f32 %v17, %v32
  %v34 = vsel %vm13, %v33, 0.0
  %35 = vadd.xlane.f32.xlu0 %v34
  %v36 = vpop.xlane.xlu0 %35
  %v37 = vsub.f32 %v36, %v24
  %v38 = vmul.f32 %v37, 1.442695
  %v39 = vpow.pop %v38
  %v40 = vsub.f32 1.0, %v39
  %v41 = vmul.f32 %v40, %v40
  %v42 = vmul.f32 %v41, %v40
  %v43 = vmul.f32 %v42, %v37
  %vm44 = vcmp.ne.s32.totalorder %v12, 4294967196
  %v45 = vsel %vm44, 1, 0
  %v46 = vcvt.s32.f32 %v45
  %v47 = vmul.f32 %v43, %v46
  %vm48 = vcmask 7168
  %v49 = vsel %vm48, %v47, 0.0
  %50 = vadd.xlane.f32.xlu0 %v49
  %v51 = vpop.xlane.xlu0 %50
  %v52 = vrot.slane %v51, 4
  %v53 = vadd.f32 %v51, %v52
  %v54 = vrot.slane %v53, 2
  %v55 = vadd.f32 %v53, %v54
  %v56 = vrot.slane %v55, 1
  %v57 = vadd.f32 %v55, %v56
  %s58 = vtos %v57
  %s59 = ssub.f32 0.0, %s58
  %v60 = vsel %vm48, %v46, 0.0
  %61 = vadd.xlane.f32.xlu0 %v60
  %v62 = vpop.xlane.xlu0 %61
  %v63 = vrot.slane %v62, 4
  %v64 = vadd.f32 %v62, %v63
  %v65 = vrot.slane %v64, 2
  %v66 = vadd.f32 %v64, %v65
  %v67 = vrot.slane %v66, 1
  %v68 = vadd.f32 %v66, %v67
  %s69 = vtos %v68
  %v70 = vlaneseq
  %v71 = vshrl.u32 %v70, 7
  %vm72 = vcmp.eq.s32.totalorder %v71, 0
  %v73 = vstv %s59
  %v74 = vstv %s69
  %v75 = vsel %vm72, %v73, %v74
  %76 = vst [vmem:[%s2] sm:$0x3] %v75
  // Predicated region
  $region10: #{focal_loss.1} parent=0 // pred_check
    _
  $region11: #{focal_loss.1} parent=0 // pred_check_branch
    %78 = sbr.rel (0) target = $region13
  $region12: #{focal_loss.1} parent=0 // pred_region
    _
  $region13: #{focal_loss.1} parent=0 // pred_fallthru
    _
  // Predicated region
  $region14: #{focal_loss.1} parent=0 // pred_check
    _
  $region15: #{focal_loss.1} parent=0 // pred_check_branch
    %80 = sbr.rel (0) target = $region17
  $region16: #{focal_loss.1} parent=0 // pred_region
    _
  $region17: #{focal_loss.1} parent=0 // pred_fallthru
    _

</llo_original>
